<compile_context>
chip_gen: v5e
topology: v5e:2x2
jax: 0.10.0
libtpu: 0.0.40
codegen_flags: <defaults>
</compile_context>

<pallas_src>
import jax
import jax.numpy as jnp
from jax import lax
from jax.experimental import pallas as pl
from jax.experimental.pallas import tpu as pltpu

# Unit shifts used by the phase-packed stride-2 convolutions.  Order must
# match the weight stacks built in _build_w0_stack / _build_w1_stack.
_SHIFTS = ((0, 0), (0, -1), (-1, 0), (-1, -1))
_SHIFT_IDX = {s: i for i, s in enumerate(_SHIFTS)}
# Half-res output phases packed in "Gray" order so every shift's live K rows
# are contiguous:  g=0:(a=0,b=0)  1:(0,1)  2:(1,1)  3:(1,0).
_GRAY = {(0, 0): 0, (0, 1): 1, (1, 1): 2, (1, 0): 3}
_BN_EPS = 1e-5


def _round_up(x, m):
    return (x + m - 1) // m * m


def _bn_fold(gamma, beta, mean, var, eps=_BN_EPS):
    scale = gamma / jnp.sqrt(var + eps)
    shift = beta - mean * scale
    return scale, shift


# -----------------------------------------------------------------------------
# Fused ConvStem kernel (one batch element per grid step)
# -----------------------------------------------------------------------------
def _make_conv_stem_kernel(Hq, Wq, fpad, w1_windows):
    Wp1 = Wq + 1
    Mp = Hq * Wp1          # matmul rows: one junk (halo-column) row per image row

    def kernel(xq_ref, w0_ref, s0_ref, w1_ref, s1_ref, w2_ref, b2_ref,
               o_ref, y0p_ref):
        C0x4 = w0_ref.shape[2]
        C1 = w1_ref.shape[2]

        # ---- conv0 (3x3 / s2 / pad1) + BN0 + ReLU, half-res phases packed ----
        # Each shifted operand is a contiguous bf16 row window of the flat
        # haloed input (prepared host-side) -> no staging copy, no memset.
        acc0 = jnp.zeros((Mp, C0x4), jnp.float32)
        for s, (dh, dw) in enumerate(_SHIFTS):
            start = (1 + dh) * Wp1 + (1 + dw)
            xs = xq_ref[0, pl.ds(start, Mp), :]
            acc0 = acc0 + jnp.dot(xs, w0_ref[s],
                                  preferred_element_type=jnp.float32)

        # Rows with j == Wq are halo-column junk; zero them so the contiguous
        # staging store below lands zeros exactly on the w==0 halo positions.
        valid = (lax.broadcasted_iota(jnp.int32, (Mp, 1), 0) % Wp1) < Wq
        y0 = jnp.where(valid, jnp.maximum(acc0 + s0_ref[...], 0.0), 0.0)

        # Stage into the flat haloed bf16 scratch.  Only the tiny top-halo
        # strip is memset, and it is memset every step (megacore-safe on the
        # "parallel" batch axis).  The store start is packed-tile aligned.
        y0p_ref[pl.ds(0, fpad + Wq + 2), :] = jnp.zeros(
            (fpad + Wq + 2, C0x4), y0p_ref.dtype)
        y0p_ref[pl.ds(fpad + Wq + 2, Mp), :] = y0.astype(y0p_ref.dtype)

        # ---- conv1 (3x3 / s2 / pad1) + BN1 + ReLU, trimmed per-shift K ------
        acc1 = jnp.zeros((Mp, C1), jnp.float32)
        for s, (dh, dw) in enumerate(_SHIFTS):
            start = fpad + (1 + dh) * Wp1 + (1 + dw)
            koff, klen = w1_windows[s]
            ys = y0p_ref[pl.ds(start, Mp), koff:koff + klen]
            acc1 = acc1 + jnp.dot(ys, w1_ref[s, koff:koff + klen, :],
                                  preferred_element_type=jnp.float32)
        y1 = jnp.maximum(acc1 + s1_ref[...], 0.0)

        # Drop the junk rows before the 1x1 conv (saves MXU work and makes the
        # output store dense), then conv2 + bias as one (tokens, embed) store.
        y1d = y1.reshape(Hq, Wp1, C1)[:, :Wq, :].reshape(Hq * Wq, C1)
        out = jnp.dot(y1d.astype(w2_ref.dtype), w2_ref[...],
                      preferred_element_type=jnp.float32) + b2_ref[...]
        o_ref[0] = out.astype(o_ref.dtype)

    return kernel


# -----------------------------------------------------------------------------
# Host-side weight preparation (BN folded, shift-indexed, Gray-packed stacks)
# -----------------------------------------------------------------------------
def _build_w0_stack(w0f):
    """BN-folded conv0 weights (C0, Cin, 3, 3) -> (4, 16*Cin, 4*C0).

    Row index: (alpha*4 + beta)*Cin + ci   (space-to-depth(4) input channel).
    Col index: gray(a, b)*C0 + co          (half-res phase-packed output ch).
    Matrix s collects all taps whose quarter-res shift is _SHIFTS[s].
    """
    C0, Cin = int(w0f.shape[0]), int(w0f.shape[1])
    stack = jnp.zeros((4, 16 * Cin, 4 * C0), jnp.float32)
    for a in range(2):
        for kh in range(3):
            mh = 2 * a + kh - 1
            alpha, dh = mh % 4, mh // 4
            for b in range(2):
                for kw in range(3):
                    mw = 2 * b + kw - 1
                    beta, dw = mw % 4, mw // 4
                    s = _SHIFT_IDX[(dh, dw)]
                    r = (alpha * 4 + beta) * Cin
                    c = _GRAY[(a, b)] * C0
                    stack = stack.at[s, r:r + Cin, c:c + C0].set(
                        jnp.transpose(w0f[:, :, kh, kw], (1, 0)))
    return stack


def _build_w1_stack(w1f):
    """BN-folded conv1 weights (C1, C0, 3, 3) -> (4, 4*C0, C1) stack consuming
    the Gray-packed stage-0 activations, plus per-shift (offset, length) K
    windows that cover exactly the non-zero rows (K trimming)."""
    C1, C0 = int(w1f.shape[0]), int(w1f.shape[1])
    stack = jnp.zeros((4, 4 * C0, C1), jnp.float32)
    lo, hi = [4] * 4, [0] * 4
    for kh in range(3):
        a = (kh - 1) % 2
        dh = (kh - 1 - a) // 2
        for kw in range(3):
            b = (kw - 1) % 2
            dw = (kw - 1 - b) // 2
            s = _SHIFT_IDX[(dh, dw)]
            g = _GRAY[(a, b)]
            lo[s], hi[s] = min(lo[s], g), max(hi[s], g + 1)
            stack = stack.at[s, g * C0:(g + 1) * C0, :].set(
                jnp.transpose(w1f[:, :, kh, kw], (1, 0)))
    windows = tuple((l * C0, (h - l) * C0) for l, h in zip(lo, hi))
    return stack, windows


# -----------------------------------------------------------------------------
# ConvStem forward (Pallas-backed)
# -----------------------------------------------------------------------------
def conv_stem_forward(x_nchw, params, out_dtype=jnp.float32):
    B, Cin, H, W = x_nchw.shape
    assert H % 4 == 0 and W % 4 == 0, "ConvStem needs H and W divisible by 4."
    Hq, Wq = H // 4, W // 4
    Wp1 = Wq + 1
    M, Mp = Hq * Wq, Hq * Wp1
    C0 = params["conv0_w"].shape[0]
    C1 = params["conv1_w"].shape[0]
    E = params["conv2_w"].shape[0]
    Cpk = 16 * Cin
    fpad = (-(Wq + 2)) % 16          # aligns the big bf16 staging store

    # Glue: NCHW -> space-to-depth(4) -> flat haloed bf16 layout.  The zero
    # halo row/col (the conv padding) is baked in host-side on the smallest
    # tensor, so the kernel needs no input staging scratch and no memset.
    xq = jnp.transpose(
        x_nchw.astype(jnp.float32).reshape(B, Cin, Hq, 4, Wq, 4),
        (0, 2, 4, 3, 5, 1)).reshape(B, Hq, Wq, Cpk)
    xq = jnp.pad(xq, ((0, 0), (1, 0), (1, 0), (0, 0)))
    n_in = _round_up((Hq + 1) * Wp1 + 1, 16)
    xq_flat = jnp.pad(xq.reshape(B, (Hq + 1) * Wp1, Cpk),
                      ((0, 0), (0, n_in - (Hq + 1) * Wp1), (0, 0)))
    xq_flat = xq_flat.astype(jnp.bfloat16)

    # Fold BN (eval mode) into the conv weights; bf16 MXU operands.
    scale0, shift0 = _bn_fold(params["bn0_gamma"], params["bn0_beta"],
                              params["bn0_mean"], params["bn0_var"])
    scale1, shift1 = _bn_fold(params["bn1_gamma"], params["bn1_beta"],
                              params["bn1_mean"], params["bn1_var"])
    w0_stack = _build_w0_stack(
        params["conv0_w"] * scale0[:, None, None, None]).astype(jnp.bfloat16)
    w1_stack, w1_windows = _build_w1_stack(
        params["conv1_w"] * scale1[:, None, None, None])
    w1_stack = w1_stack.astype(jnp.bfloat16)
    s0_all = jnp.tile(shift0, 4)[None, :].astype(jnp.float32)    # (1, 4*C0)
    s1 = shift1[None, :].astype(jnp.float32)                     # (1, C1)
    w2 = jnp.transpose(params["conv2_w"][:, :, 0, 0], (1, 0)).astype(jnp.bfloat16)
    b2 = params["conv2_b"][None, :].astype(jnp.float32)          # (1, E)

    n_y0 = _round_up(fpad + Wq + 2 + Mp, 16)
    kernel = _make_conv_stem_kernel(Hq, Wq, fpad, w1_windows)

    out = pl.pallas_call(
        kernel,
        out_shape=jax.ShapeDtypeStruct((B, M, E), out_dtype),
        grid=(B,),
        in_specs=[
            pl.BlockSpec((1, n_in, Cpk), lambda b: (b, 0, 0)),
            pl.BlockSpec((4, Cpk, 4 * C0), lambda b: (0, 0, 0)),
            pl.BlockSpec((1, 4 * C0), lambda b: (0, 0)),
            pl.BlockSpec((4, 4 * C0, C1), lambda b: (0, 0, 0)),
            pl.BlockSpec((1, C1), lambda b: (0, 0)),
            pl.BlockSpec((C1, E), lambda b: (0, 0)),
            pl.BlockSpec((1, E), lambda b: (0, 0)),
        ],
        out_specs=pl.BlockSpec((1, M, E), lambda b: (b, 0, 0)),
        scratch_shapes=[pltpu.VMEM((n_y0, 4 * C0), jnp.bfloat16)],
        compiler_params=pltpu.CompilerParams(
            dimension_semantics=("parallel",)),
    )(xq_flat, w0_stack, s0_all, w1_stack, s1, w2, b2)

    # Free (row-major compatible) view back to NHWC; norm_layer=None -> Identity.
    return out.reshape(B, Hq, Wq, E)


# -----------------------------------------------------------------------------
# Pure-JAX reference (lax.conv, same BN folding) for the correctness check
# -----------------------------------------------------------------------------
def conv_stem_reference(x_nchw, params):
    x = jnp.transpose(x_nchw, (0, 2, 3, 1)).astype(jnp.float32)
    dn = ("NHWC", "HWIO", "NHWC")
    for l in range(2):
        scale, shift = _bn_fold(params[f"bn{l}_gamma"], params[f"bn{l}_beta"],
                                params[f"bn{l}_mean"], params[f"bn{l}_var"])
        w = jnp.transpose(params[f"conv{l}_w"] * scale[:, None, None, None],
                          (2, 3, 1, 0))
        x = lax.conv_general_dilated(x, w, window_strides=(2, 2),
                                     padding=((1, 1), (1, 1)),
                                     dimension_numbers=dn)
        x = jnp.maximum(x + shift, 0.0)
    w3 = jnp.transpose(params["conv2_w"], (2, 3, 1, 0))
    x = lax.conv_general_dilated(x, w3, window_strides=(1, 1),
                                 padding=((0, 0), (0, 0)),
                                 dimension_numbers=dn)
    return x + params["conv2_b"]


# -----------------------------------------------------------------------------
# Deterministic parameter init (shapes from ConvStem.__init__, embed_dim=32)
# -----------------------------------------------------------------------------
def init_params(key, embed_dim=32):
    ks = jax.random.split(key, 10)
    c0, c1 = embed_dim // 8, embed_dim // 4
    p = {}
    p["conv0_w"] = 0.1 * jax.random.normal(ks[0], (c0, 3, 3, 3), jnp.float32)
    p["bn0_gamma"] = 1.0 + 0.1 * jax.random.normal(ks[1], (c0,), jnp.float32)
    p["bn0_beta"] = 0.1 * jax.random.normal(ks[2], (c0,), jnp.float32)
    p["bn0_mean"] = 0.1 * jax.random.normal(ks[3], (c0,), jnp.float32)
    p["bn0_var"] = jax.random.uniform(ks[4], (c0,), jnp.float32, 0.5, 1.5)
    p["conv1_w"] = 0.1 * jax.random.normal(ks[5], (c1, c0, 3, 3), jnp.float32)
    p["bn1_gamma"] = 1.0 + 0.1 * jax.random.normal(ks[6], (c1,), jnp.float32)
    p["bn1_beta"] = 0.1 * jax.random.normal(ks[7], (c1,), jnp.float32)
    p["bn1_mean"] = 0.1 * jax.random.normal(ks[8], (c1,), jnp.float32)
    p["bn1_var"] = jax.random.uniform(ks[9], (c1,), jnp.float32, 0.5, 1.5)
    kk = jax.random.split(jax.random.fold_in(key, 123), 2)
    p["conv2_w"] = 0.1 * jax.random.normal(kk[0], (embed_dim, c1, 1, 1), jnp.float32)
    p["conv2_b"] = 0.1 * jax.random.normal(kk[1], (embed_dim,), jnp.float32)
    return p


if __name__ == "__main__":
    key = jax.random.PRNGKey(0)
    embed_dim = 32          # multiple of 8, as the module asserts
    img_size = 16           # small image; patch_size fixed at 4 -> 4x4 grid
    B = 2

    kx, kp = jax.random.split(key)
    x = jax.random.normal(kx, (B, 3, img_size, img_size), jnp.float32)  # NCHW
    params = init_params(kp, embed_dim=embed_dim)

    fwd = jax.jit(conv_stem_forward)
    out = jax.block_until_ready(fwd(x, params))
    ref = jax.block_until_ready(conv_stem_reference(x, params))

    assert out.shape == (B, img_size // 4, img_size // 4, embed_dim), out.shape
    max_err = float(jnp.max(jnp.abs(out - ref)))
    # bf16 MXU operands with f32 accumulation: allow ~1% numerical slack.
    assert jnp.allclose(out, ref, rtol=3e-2, atol=3e-2), max_err
    print("KERNEL_OK")
</pallas_src>

<mosaic_0001>
module attributes {stable_mosaic.version = 11 : i64} {
  func.func @kernel(%arg0: i32, %arg1: memref<1x32x48xbf16, #tpu.memory_space<vmem>>, %arg2: memref<4x48x16xbf16, #tpu.memory_space<vmem>>, %arg3: memref<1x16xf32, #tpu.memory_space<vmem>>, %arg4: memref<4x16x8xbf16, #tpu.memory_space<vmem>>, %arg5: memref<1x8xf32, #tpu.memory_space<vmem>>, %arg6: memref<8x32xbf16, #tpu.memory_space<vmem>>, %arg7: memref<1x32xf32, #tpu.memory_space<vmem>>, %arg8: memref<1x16x32xf32, #tpu.memory_space<vmem>>, %arg9: memref<48x16xbf16, #tpu.memory_space<vmem>>) attributes {dimension_semantics = [#tpu.dimension_semantics<parallel>], iteration_bounds = array<i64: 2>, scalar_prefetch = 0 : i64, scratch_operands = 1 : i64, tpu.core_type = #tpu.core_type<tc>, window_params = [{transform_indices = @transform_0, window_bounds = array<i64: 1, 32, 48>}, {pipeline_mode = #tpu.pipeline_mode<synchronous>, transform_indices = @transform_1, window_bounds = array<i64: 4, 48, 16>}, {pipeline_mode = #tpu.pipeline_mode<synchronous>, transform_indices = @transform_2, window_bounds = array<i64: 1, 16>}, {pipeline_mode = #tpu.pipeline_mode<synchronous>, transform_indices = @transform_3, window_bounds = array<i64: 4, 16, 8>}, {pipeline_mode = #tpu.pipeline_mode<synchronous>, transform_indices = @transform_4, window_bounds = array<i64: 1, 8>}, {pipeline_mode = #tpu.pipeline_mode<synchronous>, transform_indices = @transform_5, window_bounds = array<i64: 8, 32>}, {pipeline_mode = #tpu.pipeline_mode<synchronous>, transform_indices = @transform_6, window_bounds = array<i64: 1, 32>}, {transform_indices = @transform_7, window_bounds = array<i64: 1, 16, 32>}]} {
    %cst = arith.constant 0.000000e+00 : f32
    %0 = vector.broadcast %cst : f32 to vector<20x16xf32>
    %c0 = arith.constant 0 : index
    %c6 = arith.constant 6 : index
    %c0_0 = arith.constant 0 : index
    %1 = vector.load %arg1[%c0, %c6, %c0_0] : memref<1x32x48xbf16, #tpu.memory_space<vmem>>, vector<1x20x48xbf16>
    %2 = vector.shape_cast %1 : vector<1x20x48xbf16> to vector<20x48xbf16>
    %c0_1 = arith.constant 0 : index
    %c0_2 = arith.constant 0 : index
    %c0_3 = arith.constant 0 : index
    %3 = vector.load %arg2[%c0_1, %c0_2, %c0_3] : memref<4x48x16xbf16, #tpu.memory_space<vmem>>, vector<1x48x16xbf16>
    %4 = vector.shape_cast %3 : vector<1x48x16xbf16> to vector<48x16xbf16>
    %cst_4 = arith.constant dense<0.000000e+00> : vector<20x16xf32>
    %5 = tpu.matmul %2, %4, %cst_4 {dimension_numbers = #tpu.dot_dimension_numbers<[1], [0], [0], [1], [0, 0, 1, 1], [], []>} : vector<20x48xbf16>, vector<48x16xbf16>, vector<20x16xf32> -> vector<20x16xf32>
    %6 = arith.addf %0, %5 : vector<20x16xf32>
    %c0_5 = arith.constant 0 : index
    %c5 = arith.constant 5 : index
    %c0_6 = arith.constant 0 : index
    %7 = vector.load %arg1[%c0_5, %c5, %c0_6] : memref<1x32x48xbf16, #tpu.memory_space<vmem>>, vector<1x20x48xbf16>
    %8 = vector.shape_cast %7 : vector<1x20x48xbf16> to vector<20x48xbf16>
    %c1 = arith.constant 1 : index
    %c0_7 = arith.constant 0 : index
    %c0_8 = arith.constant 0 : index
    %9 = vector.load %arg2[%c1, %c0_7, %c0_8] : memref<4x48x16xbf16, #tpu.memory_space<vmem>>, vector<1x48x16xbf16>
    %10 = vector.shape_cast %9 : vector<1x48x16xbf16> to vector<48x16xbf16>
    %cst_9 = arith.constant dense<0.000000e+00> : vector<20x16xf32>
    %11 = tpu.matmul %8, %10, %cst_9 {dimension_numbers = #tpu.dot_dimension_numbers<[1], [0], [0], [1], [0, 0, 1, 1], [], []>} : vector<20x48xbf16>, vector<48x16xbf16>, vector<20x16xf32> -> vector<20x16xf32>
    %12 = arith.addf %6, %11 : vector<20x16xf32>
    %c0_10 = arith.constant 0 : index
    %c1_11 = arith.constant 1 : index
    %c0_12 = arith.constant 0 : index
    %13 = vector.load %arg1[%c0_10, %c1_11, %c0_12] : memref<1x32x48xbf16, #tpu.memory_space<vmem>>, vector<1x20x48xbf16>
    %14 = vector.shape_cast %13 : vector<1x20x48xbf16> to vector<20x48xbf16>
    %c2 = arith.constant 2 : index
    %c0_13 = arith.constant 0 : index
    %c0_14 = arith.constant 0 : index
    %15 = vector.load %arg2[%c2, %c0_13, %c0_14] : memref<4x48x16xbf16, #tpu.memory_space<vmem>>, vector<1x48x16xbf16>
    %16 = vector.shape_cast %15 : vector<1x48x16xbf16> to vector<48x16xbf16>
    %cst_15 = arith.constant dense<0.000000e+00> : vector<20x16xf32>
    %17 = tpu.matmul %14, %16, %cst_15 {dimension_numbers = #tpu.dot_dimension_numbers<[1], [0], [0], [1], [0, 0, 1, 1], [], []>} : vector<20x48xbf16>, vector<48x16xbf16>, vector<20x16xf32> -> vector<20x16xf32>
    %18 = arith.addf %12, %17 : vector<20x16xf32>
    %c0_16 = arith.constant 0 : index
    %c0_17 = arith.constant 0 : index
    %c0_18 = arith.constant 0 : index
    %19 = vector.load %arg1[%c0_16, %c0_17, %c0_18] : memref<1x32x48xbf16, #tpu.memory_space<vmem>>, vector<1x20x48xbf16>
    %20 = vector.shape_cast %19 : vector<1x20x48xbf16> to vector<20x48xbf16>
    %c3 = arith.constant 3 : index
    %c0_19 = arith.constant 0 : index
    %c0_20 = arith.constant 0 : index
    %21 = vector.load %arg2[%c3, %c0_19, %c0_20] : memref<4x48x16xbf16, #tpu.memory_space<vmem>>, vector<1x48x16xbf16>
    %22 = vector.shape_cast %21 : vector<1x48x16xbf16> to vector<48x16xbf16>
    %cst_21 = arith.constant dense<0.000000e+00> : vector<20x16xf32>
    %23 = tpu.matmul %20, %22, %cst_21 {dimension_numbers = #tpu.dot_dimension_numbers<[1], [0], [0], [1], [0, 0, 1, 1], [], []>} : vector<20x48xbf16>, vector<48x16xbf16>, vector<20x16xf32> -> vector<20x16xf32>
    %24 = arith.addf %18, %23 : vector<20x16xf32>
    %25 = tpu.iota {dimensions = array<i32: 0>} : vector<20x1xi32>
    %c5_i32 = arith.constant 5 : i32
    %c0_i32 = arith.constant 0 : i32
    %26 = arith.cmpi eq, %c5_i32, %c0_i32 : i32
    %c1_i32 = arith.constant 1 : i32
    %27 = arith.select %26, %c1_i32, %c5_i32 : i32
    %28 = vector.broadcast %27 : i32 to vector<20x1xi32>
    %29 = arith.remsi %25, %28 : vector<20x1xi32>
    %c0_i32_22 = arith.constant 0 : i32
    %30 = vector.broadcast %c0_i32_22 : i32 to vector<20x1xi32>
    %31 = arith.cmpi ne, %29, %30 : vector<20x1xi32>
    %c0_i32_23 = arith.constant 0 : i32
    %32 = vector.broadcast %c0_i32_23 : i32 to vector<20x1xi32>
    %33 = arith.cmpi slt, %29, %32 : vector<20x1xi32>
    %c0_i32_24 = arith.constant 0 : i32
    %34 = arith.cmpi slt, %27, %c0_i32_24 : i32
    %35 = vector.broadcast %34 : i1 to vector<20x1xi1>
    %36 = vector.broadcast %35 : vector<20x1xi1> to vector<20x1xi1>
    %37 = arith.xori %33, %36 : vector<20x1xi1>
    %38 = arith.andi %37, %31 : vector<20x1xi1>
    %39 = vector.broadcast %27 : i32 to vector<20x1xi32>
    %40 = arith.addi %29, %39 : vector<20x1xi32>
    %41 = arith.select %38, %40, %29 : vector<20x1xi1>, vector<20x1xi32>
    %c4_i32 = arith.constant 4 : i32
    %42 = vector.broadcast %c4_i32 : i32 to vector<20x1xi32>
    %43 = arith.cmpi slt, %41, %42 : vector<20x1xi32>
    %c0_25 = arith.constant 0 : index
    %c0_26 = arith.constant 0 : index
    %44 = vector.load %arg3[%c0_25, %c0_26] : memref<1x16xf32, #tpu.memory_space<vmem>>, vector<1x16xf32>
    %45 = vector.broadcast %44 : vector<1x16xf32> to vector<20x16xf32>
    %46 = arith.addf %24, %45 : vector<20x16xf32>
    %cst_27 = arith.constant 0.000000e+00 : f32
    %47 = vector.broadcast %cst_27 : f32 to vector<20x16xf32>
    %48 = arith.maximumf %46, %47 : vector<20x16xf32>
    %cst_28 = arith.constant 0.000000e+00 : f32
    %49 = vector.shape_cast %43 : vector<20x1xi1> to vector<20x1xi1>
    %50 = vector.broadcast %49 : vector<20x1xi1> to vector<20x16xi1>
    %51 = vector.broadcast %cst_28 : f32 to vector<20x16xf32>
    %52 = arith.select %50, %48, %51 : vector<20x16xi1>, vector<20x16xf32>
    %cst_29 = arith.constant 0.000000e+00 : bf16
    %53 = vector.broadcast %cst_29 : bf16 to vector<16x16xbf16>
    %c0_30 = arith.constant 0 : index
    %c0_31 = arith.constant 0 : index
    %54 = vector.load %arg9[%c0_30, %c0_31] : memref<48x16xbf16, #tpu.memory_space<vmem>>, vector<16x16xbf16>
    tpu.vector_store %arg9[%c0_30, %c0_31], %53 {strides = array<i32>} : memref<48x16xbf16, #tpu.memory_space<vmem>>, vector<16x16xbf16>,
    %55 = arith.truncf %52 : vector<20x16xf32> to vector<20x16xbf16>
    %c16 = arith.constant 16 : index
    %c0_32 = arith.constant 0 : index
    %56 = vector.load %arg9[%c16, %c0_32] : memref<48x16xbf16, #tpu.memory_space<vmem>>, vector<20x16xbf16>
    tpu.vector_store %arg9[%c16, %c0_32], %55 {strides = array<i32>} : memref<48x16xbf16, #tpu.memory_space<vmem>>, vector<20x16xbf16>,
    %cst_33 = arith.constant 0.000000e+00 : f32
    %57 = vector.broadcast %cst_33 : f32 to vector<20x8xf32>
    %c16_34 = arith.constant 16 : index
    %c0_35 = arith.constant 0 : index
    %58 = vector.load %arg9[%c16_34, %c0_35] : memref<48x16xbf16, #tpu.memory_space<vmem>>, vector<20x16xbf16>
    %c0_36 = arith.constant 0 : index
    %c0_37 = arith.constant 0 : index
    %c0_38 = arith.constant 0 : index
    %59 = vector.load %arg4[%c0_36, %c0_37, %c0_38] : memref<4x16x8xbf16, #tpu.memory_space<vmem>>, vector<1x16x8xbf16>
    %60 = vector.shape_cast %59 : vector<1x16x8xbf16> to vector<16x8xbf16>
    %cst_39 = arith.constant dense<0.000000e+00> : vector<20x8xf32>
    %61 = tpu.matmul %58, %60, %cst_39 {dimension_numbers = #tpu.dot_dimension_numbers<[1], [0], [0], [1], [0, 0, 1, 1], [], []>} : vector<20x16xbf16>, vector<16x8xbf16>, vector<20x8xf32> -> vector<20x8xf32>
    %62 = arith.addf %57, %61 : vector<20x8xf32>
    %c15 = arith.constant 15 : index
    %c4 = arith.constant 4 : index
    %63 = vector.load %arg9[%c15, %c4] : memref<48x16xbf16, #tpu.memory_space<vmem>>, vector<20x8xbf16>
    %c1_40 = arith.constant 1 : index
    %c4_41 = arith.constant 4 : index
    %c0_42 = arith.constant 0 : index
    %64 = vector.load %arg4[%c1_40, %c4_41, %c0_42] : memref<4x16x8xbf16, #tpu.memory_space<vmem>>, vector<1x8x8xbf16>
    %65 = vector.shape_cast %64 : vector<1x8x8xbf16> to vector<8x8xbf16>
    %cst_43 = arith.constant dense<0.000000e+00> : vector<20x8xf32>
    %66 = tpu.matmul %63, %65, %cst_43 {dimension_numbers = #tpu.dot_dimension_numbers<[1], [0], [0], [1], [0, 0, 1, 1], [], []>} : vector<20x8xbf16>, vector<8x8xbf16>, vector<20x8xf32> -> vector<20x8xf32>
    %67 = arith.addf %62, %66 : vector<20x8xf32>
    %c11 = arith.constant 11 : index
    %c8 = arith.constant 8 : index
    %68 = vector.load %arg9[%c11, %c8] : memref<48x16xbf16, #tpu.memory_space<vmem>>, vector<20x8xbf16>
    %c2_44 = arith.constant 2 : index
    %c8_45 = arith.constant 8 : index
    %c0_46 = arith.constant 0 : index
    %69 = vector.load %arg4[%c2_44, %c8_45, %c0_46] : memref<4x16x8xbf16, #tpu.memory_space<vmem>>, vector<1x8x8xbf16>
    %70 = vector.shape_cast %69 : vector<1x8x8xbf16> to vector<8x8xbf16>
    %cst_47 = arith.constant dense<0.000000e+00> : vector<20x8xf32>
    %71 = tpu.matmul %68, %70, %cst_47 {dimension_numbers = #tpu.dot_dimension_numbers<[1], [0], [0], [1], [0, 0, 1, 1], [], []>} : vector<20x8xbf16>, vector<8x8xbf16>, vector<20x8xf32> -> vector<20x8xf32>
    %72 = arith.addf %67, %71 : vector<20x8xf32>
    %c10 = arith.constant 10 : index
    %c8_48 = arith.constant 8 : index
    %73 = vector.load %arg9[%c10, %c8_48] : memref<48x16xbf16, #tpu.memory_space<vmem>>, vector<20x4xbf16>
    %c3_49 = arith.constant 3 : index
    %c8_50 = arith.constant 8 : index
    %c0_51 = arith.constant 0 : index
    %74 = vector.load %arg4[%c3_49, %c8_50, %c0_51] : memref<4x16x8xbf16, #tpu.memory_space<vmem>>, vector<1x4x8xbf16>
    %75 = vector.shape_cast %74 : vector<1x4x8xbf16> to vector<4x8xbf16>
    %cst_52 = arith.constant dense<0.000000e+00> : vector<20x8xf32>
    %76 = tpu.matmul %73, %75, %cst_52 {dimension_numbers = #tpu.dot_dimension_numbers<[1], [0], [0], [1], [0, 0, 1, 1], [], []>} : vector<20x4xbf16>, vector<4x8xbf16>, vector<20x8xf32> -> vector<20x8xf32>
    %77 = arith.addf %72, %76 : vector<20x8xf32>
    %c0_53 = arith.constant 0 : index
    %c0_54 = arith.constant 0 : index
    %78 = vector.load %arg5[%c0_53, %c0_54] : memref<1x8xf32, #tpu.memory_space<vmem>>, vector<1x8xf32>
    %79 = vector.broadcast %78 : vector<1x8xf32> to vector<20x8xf32>
    %80 = arith.addf %77, %79 : vector<20x8xf32>
    %cst_55 = arith.constant 0.000000e+00 : f32
    %81 = vector.broadcast %cst_55 : f32 to vector<20x8xf32>
    %82 = arith.maximumf %80, %81 : vector<20x8xf32>
    %83 = vector.shape_cast %82 : vector<20x8xf32> to vector<4x5x8xf32>
    %84 = vector.extract_strided_slice %83 {offsets = [0, 0, 0], sizes = [4, 4, 8], strides = [1, 1, 1]} : vector<4x5x8xf32> to vector<4x4x8xf32>
    %85 = vector.shape_cast %84 : vector<4x4x8xf32> to vector<16x8xf32>
    %86 = arith.truncf %85 : vector<16x8xf32> to vector<16x8xbf16>
    %c0_56 = arith.constant 0 : index
    %c0_57 = arith.constant 0 : index
    %87 = vector.load %arg6[%c0_56, %c0_57] : memref<8x32xbf16, #tpu.memory_space<vmem>>, vector<8x32xbf16>
    %cst_58 = arith.constant dense<0.000000e+00> : vector<16x32xf32>
    %88 = tpu.matmul %86, %87, %cst_58 {dimension_numbers = #tpu.dot_dimension_numbers<[1], [0], [0], [1], [0, 0, 1, 1], [], []>} : vector<16x8xbf16>, vector<8x32xbf16>, vector<16x32xf32> -> vector<16x32xf32>
    %c0_59 = arith.constant 0 : index
    %c0_60 = arith.constant 0 : index
    %89 = vector.load %arg7[%c0_59, %c0_60] : memref<1x32xf32, #tpu.memory_space<vmem>>, vector<1x32xf32>
    %90 = vector.broadcast %89 : vector<1x32xf32> to vector<16x32xf32>
    %91 = arith.addf %88, %90 : vector<16x32xf32>
    %c0_61 = arith.constant 0 : index
    %c0_62 = arith.constant 0 : index
    %c0_63 = arith.constant 0 : index
    %92 = vector.load %arg8[%c0_61, %c0_62, %c0_63] : memref<1x16x32xf32, #tpu.memory_space<vmem>>, vector<1x16x32xf32>
    %93 = vector.shape_cast %92 : vector<1x16x32xf32> to vector<16x32xf32>
    %94 = vector.shape_cast %91 : vector<16x32xf32> to vector<1x16x32xf32>
    tpu.vector_store %arg8[%c0_61, %c0_62, %c0_63], %94 {strides = array<i32>} : memref<1x16x32xf32, #tpu.memory_space<vmem>>, vector<1x16x32xf32>,
    return
  }
  func.func @transform_0(%arg0: i32) -> (i32, i32, i32) {
    %c0_i32 = arith.constant 0 : i32
    %c0_i32_0 = arith.constant 0 : i32
    %c0_i32_1 = arith.constant 0 : i32
    return %arg0, %c0_i32, %c0_i32_0 : i32, i32, i32
  }
  func.func @transform_1(%arg0: i32) -> (i32, i32, i32) {
    %c0_i32 = arith.constant 0 : i32
    %c0_i32_0 = arith.constant 0 : i32
    %c0_i32_1 = arith.constant 0 : i32
    %c0_i32_2 = arith.constant 0 : i32
    return %c0_i32, %c0_i32_0, %c0_i32_1 : i32, i32, i32
  }
  func.func @transform_2(%arg0: i32) -> (i32, i32) {
    %c0_i32 = arith.constant 0 : i32
    %c0_i32_0 = arith.constant 0 : i32
    %c0_i32_1 = arith.constant 0 : i32
    return %c0_i32, %c0_i32_0 : i32, i32
  }
  func.func @transform_3(%arg0: i32) -> (i32, i32, i32) {
    %c0_i32 = arith.constant 0 : i32
    %c0_i32_0 = arith.constant 0 : i32
    %c0_i32_1 = arith.constant 0 : i32
    %c0_i32_2 = arith.constant 0 : i32
    return %c0_i32, %c0_i32_0, %c0_i32_1 : i32, i32, i32
  }
  func.func @transform_4(%arg0: i32) -> (i32, i32) {
    %c0_i32 = arith.constant 0 : i32
    %c0_i32_0 = arith.constant 0 : i32
    %c0_i32_1 = arith.constant 0 : i32
    return %c0_i32, %c0_i32_0 : i32, i32
  }
  func.func @transform_5(%arg0: i32) -> (i32, i32) {
    %c0_i32 = arith.constant 0 : i32
    %c0_i32_0 = arith.constant 0 : i32
    %c0_i32_1 = arith.constant 0 : i32
    return %c0_i32, %c0_i32_0 : i32, i32
  }
  func.func @transform_6(%arg0: i32) -> (i32, i32) {
    %c0_i32 = arith.constant 0 : i32
    %c0_i32_0 = arith.constant 0 : i32
    %c0_i32_1 = arith.constant 0 : i32
    return %c0_i32, %c0_i32_0 : i32, i32
  }
  func.func @transform_7(%arg0: i32) -> (i32, i32, i32) {
    %c0_i32 = arith.constant 0 : i32
    %c0_i32_0 = arith.constant 0 : i32
    %c0_i32_1 = arith.constant 0 : i32
    return %arg0, %c0_i32, %c0_i32_0 : i32, i32, i32
  }
}

</mosaic_0001>

<llo_original>
// kernel: tile.8
$region0: #{tile.8}
  #allocation0 [shape = 's32[1]{0}', space=sflag, size = 0x4, scoped, tag = 'scoped memory for tile.8']
  %s0 = inlined_call_operand.vmem [shape: f32[4], index: 0, kind: input, shape index: {}]
  %s1 = inlined_call_operand.vmem [shape: f32[4,4], index: 1, kind: output, shape index: {}]
  // Predicated region
  $region2: #{tile.8} parent=0 // pred_check
    _
  $region3: #{tile.8} parent=0 // pred_check_branch
    %3 = sbr.rel (0) target = $region5
  $region4: #{tile.8} parent=0 // pred_region
    _
  $region5: #{tile.8} parent=0 // pred_fallthru
    _
  %v4 = vld [vmem:[%s0] ss:$0 sm:$0xff]
  %5 = vst [vmem:[%s1] sm:$0xf] %v4

// kernel: tile.9
$region0: #{tile.9}
  %s0 = inlined_call_operand.vmem [shape: f32[4,4], index: 0, kind: input, shape index: {}]
  %s1 = inlined_call_operand.vmem [shape: f32[1,16], index: 1, kind: output, shape index: {}]
  $region1: #{tile.9} parent=0
    #allocation0 [shape = 'u8[4096]{0}', space=vmem, size = 0x1000, scoped, tag = 'scoped mem for output reshape']
    #allocation1 [shape = 'u8[4096]{0}', space=vmem, size = 0x1000, scoped, tag = 'scoped mem for input reshape']
    %s3 = ssub.s32 16, 1
    %v4 = vld [vmem:[%s0] sm:%s3]
    %5 = vst [vmem:[#allocation1] sm:%s3] %v4
    %v6 = vld [vmem:[#allocation1] sm:$0x1]
    %vm7 = vcmask 31744
    %8 = vst.msk [vmem:[#allocation0] sm:$0x1] %vm7, %v6
    %s9 = scalar_lea.vmem [#allocation1], 3
    %v10 = vld [vmem:[%s9] sm:$0x1]
    %11 = vrot.lane.b32.xlu0 %v10, 12
    %v12 = vpop.permute.xlu0 %11
    %vm13 = vcmask 130144
    %14 = vst.msk [vmem:[#allocation0] sm:$0x1] %vm13, %v12
    %s15 = scalar_lea.vmem [#allocation1], 2
    %v16 = vld [vmem:[%s15] sm:$0x1]
    %17 = vrot.lane.b32.xlu0 %v16, 8
    %v18 = vpop.permute.xlu0 %17
    %vm19 = vcmask 97344
    %20 = vst.msk [vmem:[#allocation0] sm:$0x1] %vm19, %v18
    %s21 = scalar_lea.vmem [#allocation1], 1
    %v22 = vld [vmem:[%s21] sm:$0x1]
    %23 = vrot.lane.b32.xlu0 %v22, 4
    %v24 = vpop.permute.xlu0 %23
    %vm25 = vcmask 64544
    %26 = vst.msk [vmem:[#allocation0] sm:$0x1] %vm25, %v24
    %s28 = ssub.s32 2, 1
    %v29 = vld [vmem:[#allocation0] sm:%s28]
    %s31 = ssub.s32 2, 1
    %32 = vst [vmem:[%s1] sm:%s31] %v29

// kernel: conv_stem_forward.1
$region0: #{conv_stem_forward.1}
  #allocation0 [shape = 'u32[]', space=smem, size = 0x4, offset = 0x4, fixed_abs, tag = 'smem constant byte address 0x4 - core index']
  #allocation1 [shape = 'u32[72,128]{1,0:T(1,128)}', space=vmem, size = 0x9000, scoped, tag = 'internal scratch']
  #allocation2 [shape = 'bf16[48,16]{1,0:T(8,128)(2,1)}', space=vmem, size = 0x3000, scoped, tag = 'scratch operand']
  %s0 = inlined_call_operand.vmem [shape: bf16[2,32,48], index: 0, kind: input, shape index: {}]
  %s1 = inlined_call_operand.vmem [shape: bf16[4,48,16], index: 1, kind: input, shape index: {}]
  %s2 = inlined_call_operand.vmem [shape: f32[1,16], index: 2, kind: input, shape index: {}]
  %s3 = inlined_call_operand.vmem [shape: bf16[4,16,8], index: 3, kind: input, shape index: {}]
  %s4 = inlined_call_operand.vmem [shape: f32[1,8], index: 4, kind: input, shape index: {}]
  %s5 = inlined_call_operand.vmem [shape: bf16[8,32], index: 5, kind: input, shape index: {}]
  %s6 = inlined_call_operand.vmem [shape: f32[1,32], index: 6, kind: input, shape index: {}]
  %s7 = inlined_call_operand.hbm [shape: f32[2,16,32], index: 7, kind: output, shape index: {}]
  %s8 = sld [smem:[#allocation0]]
  $region61: #{conv_stem_forward.1} parent=0
    _
  %s10 = ssub.s32 1, %s8
  %s11 = scalar_select 0, %s10, %s8
  $region1: #{conv_stem_forward.1} parent=0
    #allocation3 [shape = 'u8[16384]{0}', space=vmem, size = 0x4000, scoped, tag = 'output window, operand 0']
    #allocation4 [shape = 's32[2]{0}', space=sflag, size = 0x8, scoped, tag = 'scoped memory for conv_stem_forward.1']
    %12 = vsyncpa [#allocation4], 0
    %s13 = scalar_lea.sflag [#allocation4], 1
    %14 = vsyncpa %s13, 0
    loop: start=0, step=1, limit=4
    $region2: #{conv_stem_forward.1} parent=1 // loop_pre_header
      _
    $region3: #{conv_stem_forward.1} parent=1 // loop_header
      %s16 = sphi 0, %s20
      %p17 = scmp.ge.s32.totalorder %s16, 4
      %s26 = sphi 0, %s28
      %s29 = sphi 0, %s26
      %s30 = sphi 0, %s29
      %s46 = sphi 0, %s30
      %s50 = sphi 0, %s50
      %s52 = sphi 0, %s50
      %s53 = sphi 0, %s52
      %s67 = sphi 0, %s53
      %s71 = sphi 0, %s71
      %s73 = sphi 0, %s71
      %s74 = sphi 0, %s73
      %s88 = sphi 0, %s74
      %s92 = sphi 0, %s92
      %s94 = sphi 0, %s92
      %s95 = sphi 0, %s94
      %s109 = sphi 0, %s95
      %s113 = sphi 0, %s113
      %s115 = sphi 0, %s113
      %s116 = sphi 0, %s115
      %s130 = sphi 0, %s116
      %s134 = sphi 0, %s134
      %s136 = sphi 0, %s134
      %s137 = sphi 0, %s136
      %s151 = sphi 0, %s137
      %s155 = sphi 0, %s155
      %s157 = sphi 0, %s155
      %s158 = sphi 0, %s157
      %s172 = sphi 0, %s158
      %s178 = sphi 0, %s180
      %s181 = sphi 0, %s178
      %s182 = sphi 0, %s181
      %s198 = sphi 0, %s182
    $region4: #{conv_stem_forward.1} parent=1 // loop_header_branch
      %19 = sbr.rel (%p17) target = $region8
    $region5: #{conv_stem_forward.1} parent=1 // loop_body
      %s21 = ssub.s32 %s16, 1
      %s22 = ssub.s32 %s16, 2
      %s23 = sadd.s32 %s16, 1
      %s24 = ssub.s32 %s16, %s23
      %p25 = scmp.eq.s32.totalorder %s24, 0
      %s27 = sadd.s32 %s26, 1
      %s28 = scalar_select %p25, %s26, %s27
      %p31 = pneg %p25
      %p32 = scmp.eq.s32.totalorder %s16, 1
      %p33 = por %p31, %p32
      %p34 = scmp.ne.s32.totalorder %s26, %s29
      %p35 = scmp.eq.s32.totalorder %s16, 0
      %p36 = por %p34, %p35
      %p37 = scmp.ne.s32.totalorder %s26, %s29
      %p38 = scmp.eq.s32.totalorder %s21, 1
      %p39 = por %p37, %p38
      %p40 = scmp.ne.s32.totalorder %s29, %s30
      %p41 = scmp.eq.s32.totalorder %s21, 0
      %p42 = por %p40, %p41
      %p43 = scmp.ne.s32.totalorder %s29, %s30
      %p44 = scmp.eq.s32.totalorder %s22, 1
      %p45 = por %p43, %p44
      %p47 = scmp.ne.s32.totalorder %s30, %s46
      %p48 = scmp.eq.s32.totalorder %s22, 0
      %p49 = por %p47, %p48
      %s51 = sadd.s32 %s50, 1
      %p54 = scmp.eq.s32.totalorder %s16, 1
      %p55 = scmp.ne.s32.totalorder %s50, %s52
      %p56 = scmp.eq.s32.totalorder %s16, 0
      %p57 = por %p55, %p56
      %p58 = scmp.ne.s32.totalorder %s50, %s52
      %p59 = scmp.eq.s32.totalorder %s21, 1
      %p60 = por %p58, %p59
      %p61 = scmp.ne.s32.totalorder %s52, %s53
      %p62 = scmp.eq.s32.totalorder %s21, 0
      %p63 = por %p61, %p62
      %p64 = scmp.ne.s32.totalorder %s52, %s53
      %p65 = scmp.eq.s32.totalorder %s22, 1
      %p66 = por %p64, %p65
      %p68 = scmp.ne.s32.totalorder %s53, %s67
      %p69 = scmp.eq.s32.totalorder %s22, 0
      %p70 = por %p68, %p69
      %s72 = sadd.s32 %s71, 1
      %p75 = scmp.eq.s32.totalorder %s16, 1
      %p76 = scmp.ne.s32.totalorder %s71, %s73
      %p77 = scmp.eq.s32.totalorder %s16, 0
      %p78 = por %p76, %p77
      %p79 = scmp.ne.s32.totalorder %s71, %s73
      %p80 = scmp.eq.s32.totalorder %s21, 1
      %p81 = por %p79, %p80
      %p82 = scmp.ne.s32.totalorder %s73, %s74
      %p83 = scmp.eq.s32.totalorder %s21, 0
      %p84 = por %p82, %p83
      %p85 = scmp.ne.s32.totalorder %s73, %s74
      %p86 = scmp.eq.s32.totalorder %s22, 1
      %p87 = por %p85, %p86
      %p89 = scmp.ne.s32.totalorder %s74, %s88
      %p90 = scmp.eq.s32.totalorder %s22, 0
      %p91 = por %p89, %p90
      %s93 = sadd.s32 %s92, 1
      %p96 = scmp.eq.s32.totalorder %s16, 1
      %p97 = scmp.ne.s32.totalorder %s92, %s94
      %p98 = scmp.eq.s32.totalorder %s16, 0
      %p99 = por %p97, %p98
      %p100 = scmp.ne.s32.totalorder %s92, %s94
      %p101 = scmp.eq.s32.totalorder %s21, 1
      %p102 = por %p100, %p101
      %p103 = scmp.ne.s32.totalorder %s94, %s95
      %p104 = scmp.eq.s32.totalorder %s21, 0
      %p105 = por %p103, %p104
      %p106 = scmp.ne.s32.totalorder %s94, %s95
      %p107 = scmp.eq.s32.totalorder %s22, 1
      %p108 = por %p106, %p107
      %p110 = scmp.ne.s32.totalorder %s95, %s109
      %p111 = scmp.eq.s32.totalorder %s22, 0
      %p112 = por %p110, %p111
      %s114 = sadd.s32 %s113, 1
      %p117 = scmp.eq.s32.totalorder %s16, 1
      %p118 = scmp.ne.s32.totalorder %s113, %s115
      %p119 = scmp.eq.s32.totalorder %s16, 0
      %p120 = por %p118, %p119
      %p121 = scmp.ne.s32.totalorder %s113, %s115
      %p122 = scmp.eq.s32.totalorder %s21, 1
      %p123 = por %p121, %p122
      %p124 = scmp.ne.s32.totalorder %s115, %s116
      %p125 = scmp.eq.s32.totalorder %s21, 0
      %p126 = por %p124, %p125
      %p127 = scmp.ne.s32.totalorder %s115, %s116
      %p128 = scmp.eq.s32.totalorder %s22, 1
      %p129 = por %p127, %p128
      %p131 = scmp.ne.s32.totalorder %s116, %s130
      %p132 = scmp.eq.s32.totalorder %s22, 0
      %p133 = por %p131, %p132
      %s135 = sadd.s32 %s134, 1
      %p138 = scmp.eq.s32.totalorder %s16, 1
      %p139 = scmp.ne.s32.totalorder %s134, %s136
      %p140 = scmp.eq.s32.totalorder %s16, 0
      %p141 = por %p139, %p140
      %p142 = scmp.ne.s32.totalorder %s134, %s136
      %p143 = scmp.eq.s32.totalorder %s21, 1
      %p144 = por %p142, %p143
      %p145 = scmp.ne.s32.totalorder %s136, %s137
      %p146 = scmp.eq.s32.totalorder %s21, 0
      %p147 = por %p145, %p146
      %p148 = scmp.ne.s32.totalorder %s136, %s137
      %p149 = scmp.eq.s32.totalorder %s22, 1
      %p150 = por %p148, %p149
      %p152 = scmp.ne.s32.totalorder %s137, %s151
      %p153 = scmp.eq.s32.totalorder %s22, 0
      %p154 = por %p152, %p153
      %s156 = sadd.s32 %s155, 1
      %p159 = scmp.eq.s32.totalorder %s16, 1
      %p160 = scmp.ne.s32.totalorder %s155, %s157
      %p161 = scmp.eq.s32.totalorder %s16, 0
      %p162 = por %p160, %p161
      %p163 = scmp.ne.s32.totalorder %s155, %s157
      %p164 = scmp.eq.s32.totalorder %s21, 1
      %p165 = por %p163, %p164
      %p166 = scmp.ne.s32.totalorder %s157, %s158
      %p167 = scmp.eq.s32.totalorder %s21, 0
      %p168 = por %p166, %p167
      %p169 = scmp.ne.s32.totalorder %s157, %s158
      %p170 = scmp.eq.s32.totalorder %s22, 1
      %p171 = por %p169, %p170
      %p173 = scmp.ne.s32.totalorder %s158, %s172
      %p174 = scmp.eq.s32.totalorder %s22, 0
      %p175 = por %p173, %p174
      %s176 = ssub.s32 %s16, %s23
      %p177 = scmp.eq.s32.totalorder %s176, 0
      %s179 = sadd.s32 %s178, 1
      %s180 = scalar_select %p177, %s178, %s179
      %p183 = pneg %p177
      %p184 = scmp.eq.s32.totalorder %s16, 1
      %p185 = por %p183, %p184
      %p186 = scmp.ne.s32.totalorder %s178, %s181
      %p187 = scmp.eq.s32.totalorder %s16, 0
      %p188 = por %p186, %p187
      %p189 = scmp.ne.s32.totalorder %s178, %s181
      %p190 = scmp.eq.s32.totalorder %s21, 1
      %p191 = por %p189, %p190
      %p192 = scmp.ne.s32.totalorder %s181, %s182
      %p193 = scmp.eq.s32.totalorder %s21, 0
      %p194 = por %p192, %p193
      %p195 = scmp.ne.s32.totalorder %s181, %s182
      %p196 = scmp.eq.s32.totalorder %s22, 1
      %p197 = por %p195, %p196
      %p199 = scmp.ne.s32.totalorder %s182, %s198
      %p200 = scmp.eq.s32.totalorder %s22, 0
      %p201 = por %p199, %p200
      %p202 = scmp.le.s32.totalorder 1, %s16
      %p203 = scmp.lt.s32.totalorder %s16, 3
      %p204 = pnand %p202, %p203
      %p205 = pneg %p204
      // Predicated region
      $region9: #{conv_stem_forward.1} parent=5 // pred_check
        _
      $region10: #{conv_stem_forward.1} parent=5 // pred_check_branch
        %207 = sbr.rel (%p204) target = $region12
      $region11: #{conv_stem_forward.1} parent=5 // pred_region
        %s208 = ssub.s32 %s16, 1
        // Predicated region
        $region13: #{conv_stem_forward.1} parent=11 // pred_check
          %p209 = pneg %p63
        $region14: #{conv_stem_forward.1} parent=11 // pred_check_branch
          %211 = sbr.rel (%p209) target = $region16
        $region15: #{conv_stem_forward.1} parent=11 // pred_region
          _
        $region16: #{conv_stem_forward.1} parent=11 // pred_fallthru
          _
        // Predicated region
        $region17: #{conv_stem_forward.1} parent=11 // pred_check
          %p212 = pneg %p84
        $region18: #{conv_stem_forward.1} parent=11 // pred_check_branch
          %214 = sbr.rel (%p212) target = $region20
        $region19: #{conv_stem_forward.1} parent=11 // pred_region
          _
        $region20: #{conv_stem_forward.1} parent=11 // pred_fallthru
          _
        // Predicated region
        $region21: #{conv_stem_forward.1} parent=11 // pred_check
          %p215 = pneg %p105
        $region22: #{conv_stem_forward.1} parent=11 // pred_check_branch
          %217 = sbr.rel (%p215) target = $region24
        $region23: #{conv_stem_forward.1} parent=11 // pred_region
          _
        $region24: #{conv_stem_forward.1} parent=11 // pred_fallthru
          _
        // Predicated region
        $region25: #{conv_stem_forward.1} parent=11 // pred_check
          %p218 = pneg %p126
        $region26: #{conv_stem_forward.1} parent=11 // pred_check_branch
          %220 = sbr.rel (%p218) target = $region28
        $region27: #{conv_stem_forward.1} parent=11 // pred_region
          _
        $region28: #{conv_stem_forward.1} parent=11 // pred_fallthru
          _
        // Predicated region
        $region29: #{conv_stem_forward.1} parent=11 // pred_check
          %p221 = pneg %p147
        $region30: #{conv_stem_forward.1} parent=11 // pred_check_branch
          %223 = sbr.rel (%p221) target = $region32
        $region31: #{conv_stem_forward.1} parent=11 // pred_region
          _
        $region32: #{conv_stem_forward.1} parent=11 // pred_fallthru
          _
        // Predicated region
        $region33: #{conv_stem_forward.1} parent=11 // pred_check
          %p224 = pneg %p168
        $region34: #{conv_stem_forward.1} parent=11 // pred_check_branch
          %226 = sbr.rel (%p224) target = $region36
        $region35: #{conv_stem_forward.1} parent=11 // pred_region
          _
        $region36: #{conv_stem_forward.1} parent=11 // pred_fallthru
          _
      $region12: #{conv_stem_forward.1} parent=5 // pred_fallthru
        _
      %p227 = scmp.lt.s32.totalorder %s16, 2
      // Predicated region
      $region37: #{conv_stem_forward.1} parent=5 // pred_check
        %p228 = pneg %p227
      $region38: #{conv_stem_forward.1} parent=5 // pred_check_branch
        %230 = sbr.rel (%p228) target = $region40
      $region39: #{conv_stem_forward.1} parent=5 // pred_region
        // Predicated region
        $region41: #{conv_stem_forward.1} parent=39 // pred_check
          %p231 = pneg %p36
        $region42: #{conv_stem_forward.1} parent=39 // pred_check_branch
          %233 = sbr.rel (%p231) target = $region44
        $region43: #{conv_stem_forward.1} parent=39 // pred_region
          %p234 = scmp.lt.s32.totalorder %s16, 1
          %s235 = scalar_select %p234, %s16, 1
          %s236 = smul.addr %s235, 4
          %s237 = smul.addr %s236, 4
          %s238 = scalar_lea.vmem %s0, %s237
        $region44: #{conv_stem_forward.1} parent=39 // pred_fallthru
          _
      $region40: #{conv_stem_forward.1} parent=5 // pred_fallthru
        _
      %p239 = scmp.le.s32.totalorder 1, %s16
      %p240 = scmp.lt.s32.totalorder %s16, 3
      %p241 = pnand %p239, %p240
      %p242 = pneg %p241
      // Predicated region
      $region45: #{conv_stem_forward.1} parent=5 // pred_check
        _
      $region46: #{conv_stem_forward.1} parent=5 // pred_check_branch
        %244 = sbr.rel (%p241) target = $region48
      $region47: #{conv_stem_forward.1} parent=5 // pred_region
        %s245 = ssub.s32 %s16, 1
        %p246 = scmp.lt.s32.totalorder %s21, 1
        %s247 = scalar_select %p246, %s21, 1
        %s248 = smul.addr %s247, 4
        %s249 = smul.addr %s248, 4
        %s250 = scalar_lea.vmem %s0, %s249
        %p251 = pneg %p42
        %p252 = pneg %p39
        %p253 = pneg %p63
        %p254 = pneg %p60
        %p255 = pneg %p84
        %p256 = pneg %p81
        %p257 = pneg %p105
        %p258 = pneg %p102
        %p259 = pneg %p126
        %p260 = pneg %p123
        %p261 = pneg %p147
        %p262 = pneg %p144
        %p263 = pneg %p168
        %p264 = pneg %p165
        %p265 = pneg %p194
        %p266 = pneg %p191
        %s267 = sand.u32 %s181, 1
        %s268 = scalar_lea.sflag [#allocation4], %s267
        %s269 = sand.u32 %s181, 1
        %s270 = smul.addr %s269, 16
        %s271 = scalar_lea.vmem [#allocation3], %s270
        %p272 = scmp.lt.s32.totalorder %s21, 1
        %s273 = scalar_select %p272, %s21, 1
        %s274 = smul.addr %s273, 4
        %s275 = smul.addr %s274, 4
        %s276 = scalar_lea.vmem %s0, %s275
        %v278 = vld [vmem:[%s276] sm:$0x8]
        %v279 = vld [vmem:[%s276 + $0x4] sm:$0xf]
        %v280 = vld [vmem:[%s276 + $0x8] sm:$0xf]
        %v281 = vld [vmem:[%s276 + $0xc] sm:$0x1]
        %v282 = vld [vmem:[%s1] sm:$0xf]
        %v283 = vld [vmem:[%s1 + $0x4] sm:$0xf]
        %v284 = vld [vmem:[%s1 + $0x8] sm:$0xf]
        %v285 = vld [vmem:[%s1 + $0xc] sm:$0xf]
        %v286 = vld [vmem:[%s1 + $0x10] sm:$0xf]
        %v287 = vld [vmem:[%s1 + $0x14] sm:$0xf]
        %v288 = vld [vmem:[%s276] sm:$0xc]
        %s289 = scalar_lea.vmem %s1, 24
        %v290 = vld [vmem:[%s289] sm:$0xf]
        %v291 = vld [vmem:[%s289 + $0x4] sm:$0xf]
        %v292 = vld [vmem:[%s289 + $0x8] sm:$0xf]
        %v293 = vld [vmem:[%s289 + $0xc] sm:$0xf]
        %v294 = vld [vmem:[%s289 + $0x10] sm:$0xf]
        %v295 = vld [vmem:[%s289 + $0x14] sm:$0xf]
        %v300 = vunpack.c.l.b16 %v288
        %v301 = vunpack.c.l.b16 %v279
        %v302 = vunpack.c.l.b16 %v280
        %v303 = vunpack.c.l.b16 %v281
        %v304 = vpack.c.b16 %v301, %v300
        %v305 = vpack.c.b16 %v303, %v302
        %vm306 = vsmask.f32 5376
        %v308 = vshrl.u32 %v304, 16
        %v310 = vrot.slane %v308, 2
        %v311 = vshll.u32 %v304, 16
        %v313 = vrot.slane %v311, 3
        %v314 = vor.u32 %v310, %v313
        %v316 = vshrl.u32 %v305, 16
        %v318 = vrot.slane %v316, 2
        %v319 = vshll.u32 %v305, 16
        %v321 = vrot.slane %v319, 3
        %v322 = vor.u32 %v318, %v321
        %v323 = vsel %vm306, %v314, %v322
        %v330 = vunpack.c.l.b16 %v290
        %v331 = vunpack.c.l.b16 %v291
        %v332 = vunpack.c.l.b16 %v292
        %v333 = vunpack.c.l.b16 %v293
        %v334 = vunpack.c.l.b16 %v294
        %v335 = vunpack.c.l.b16 %v295
        %v336 = vpack.c.b16 %v331, %v330
        %v337 = vpack.c.b16 %v333, %v332
        %v338 = vpack.c.b16 %v335, %v334
        %vm342 = vcmask 392192
        %v344 = vsel %vm342, %v323, 0
        %v347 = vsel %vm342, %v322, 0
        %349 = vmatpush.bf16.msra.mxu0 0
        %350 = vmatpush.bf16.msra.mxu0 0
        %351 = vmatpush.bf16.msra.mxu0 0
        %352 = vmatpush.bf16.msra.mxu0 0
        %353 = vmatpush.bf16.msra.mxu0 0
        %354 = vmatpush.bf16.msra.mxu0 %v338
        %355 = vmatpush.bf16.msra.mxu0 %v337
        %356 = vmatpush.bf16.msra.mxu0 %v336
        %357 = vmatmul.bf16.gmra.mxu0 %v344
        %v358 = vpop.f32.mrf.mxu0
        %v359 = vadd.f32 0.0, %v358
        %v360 = vpop.f32.mrf.mxu0
        %v361 = vadd.f32 0.0, %v360
        %362 = vmatmul.bf16.gmra.mxu0 %v347
        %v363 = vpop.f32.mrf.mxu0
        %v364 = vadd.f32 0.0, %v363
        %v365 = vpop.f32.mrf.mxu0
        %366 = vdwg.mxu0
        %v368 = vunpack.c.l.b16 %v278
        %v369 = vpack.c.b16 %v301, %v368
        %vm370 = vcmask 1044480
        %v371 = vrot.slane %v369, 3
        %v372 = vrot.slane %v305, 3
        %v373 = vsel %vm370, %v371, %v372
        %v380 = vunpack.c.l.b16 %v282
        %v381 = vunpack.c.l.b16 %v283
        %v382 = vunpack.c.l.b16 %v284
        %v383 = vunpack.c.l.b16 %v285
        %v384 = vunpack.c.l.b16 %v286
        %v385 = vunpack.c.l.b16 %v287
        %v386 = vpack.c.b16 %v381, %v380
        %v387 = vpack.c.b16 %v383, %v382
        %v388 = vpack.c.b16 %v385, %v384
        %v393 = vsel %vm342, %v373, 0
        %v396 = vsel %vm342, %v372, 0
        %398 = vmatpush.bf16.msra.mxu0 0
        %399 = vmatpush.bf16.msra.mxu0 0
        %400 = vmatpush.bf16.msra.mxu0 0
        %401 = vmatpush.bf16.msra.mxu0 0
        %402 = vmatpush.bf16.msra.mxu0 0
        %403 = vmatpush.bf16.msra.mxu0 %v388
        %404 = vmatpush.bf16.msra.mxu0 %v387
        %405 = vmatpush.bf16.msra.mxu0 %v386
        %406 = vmatmul.bf16.gmra.mxu0 %v393
        %v407 = vpop.f32.mrf.mxu0
        %v408 = vadd.f32 %v359, %v407
        %v409 = vpop.f32.mrf.mxu0
        %v410 = vadd.f32 %v361, %v409
        %411 = vmatmul.bf16.gmra.mxu0 %v396
        %v412 = vpop.f32.mrf.mxu0
        %v413 = vadd.f32 %v364, %v412
        %v414 = vpop.f32.mrf.mxu0
        %415 = vdwg.mxu0
        %v416 = vld [vmem:[%s276] sm:$0xf]
        %v417 = vld [vmem:[%s276 + $0x4] sm:$0xf]
        %v418 = vld [vmem:[%s276 + $0x8] sm:$0x7]
        %s419 = scalar_lea.vmem %s1, 48
        %v420 = vld [vmem:[%s419] sm:$0xf]
        %v421 = vld [vmem:[%s419 + $0x4] sm:$0xf]
        %v422 = vld [vmem:[%s419 + $0x8] sm:$0xf]
        %v423 = vld [vmem:[%s419 + $0xc] sm:$0xf]
        %v424 = vld [vmem:[%s419 + $0x10] sm:$0xf]
        %v425 = vld [vmem:[%s419 + $0x14] sm:$0xf]
        %v429 = vunpack.c.l.b16 %v416
        %v430 = vunpack.c.l.b16 %v417
        %v431 = vunpack.c.l.b16 %v418
        %v432 = vpack.c.b16 %v430, %v429
        %v433 = vpack.c.b16 %v431, %v431
        %vm434 = vsmask.f32 7424
        %v436 = vshrl.u32 %v432, 16
        %v438 = vshll.u32 %v432, 16
        %v440 = vrot.slane %v438, 1
        %v441 = vor.u32 %v436, %v440
        %v443 = vshll.u32 %v433, 16
        %v445 = vrot.slane %v443, 1
        %v446 = vsel %vm434, %v441, %v445
        %v447 = vshrl.u32 %v433, 16
        %v449 = vor.u32 %v447, %v445
        %v456 = vunpack.c.l.b16 %v420
        %v457 = vunpack.c.l.b16 %v421
        %v458 = vunpack.c.l.b16 %v422
        %v459 = vunpack.c.l.b16 %v423
        %v460 = vunpack.c.l.b16 %v424
        %v461 = vunpack.c.l.b16 %v425
        %v462 = vpack.c.b16 %v457, %v456
        %v463 = vpack.c.b16 %v459, %v458
        %v464 = vpack.c.b16 %v461, %v460
        %v469 = vsel %vm342, %v446, 0
        %v472 = vsel %vm342, %v449, 0
        %474 = vmatpush.bf16.msra.mxu0 0
        %475 = vmatpush.bf16.msra.mxu0 0
        %476 = vmatpush.bf16.msra.mxu0 0
        %477 = vmatpush.bf16.msra.mxu0 0
        %478 = vmatpush.bf16.msra.mxu0 0
        %479 = vmatpush.bf16.msra.mxu0 %v464
        %480 = vmatpush.bf16.msra.mxu0 %v463
        %481 = vmatpush.bf16.msra.mxu0 %v462
        %482 = vmatmul.bf16.gmra.mxu0 %v469
        %v483 = vpop.f32.mrf.mxu0
        %v484 = vadd.f32 0.0, %v483
        %v485 = vpop.f32.mrf.mxu0
        %v486 = vadd.f32 0.0, %v485
        %487 = vmatmul.bf16.gmra.mxu0 %v472
        %v488 = vpop.f32.mrf.mxu0
        %v489 = vadd.f32 0.0, %v488
        %v490 = vpop.f32.mrf.mxu0
        %491 = vdwg.mxu0
        %v492 = vadd.f32 %v408, %v484
        %v493 = vadd.f32 %v410, %v486
        %v494 = vadd.f32 %v413, %v489
        %v495 = vld [vmem:[%s276 + $0x8] sm:$0x3]
        %s496 = scalar_lea.vmem %s1, 72
        %v497 = vld [vmem:[%s496] sm:$0xf]
        %v498 = vld [vmem:[%s496 + $0x4] sm:$0xf]
        %v499 = vld [vmem:[%s496 + $0x8] sm:$0xf]
        %v500 = vld [vmem:[%s496 + $0xc] sm:$0xf]
        %v501 = vld [vmem:[%s496 + $0x10] sm:$0xf]
        %v502 = vld [vmem:[%s496 + $0x14] sm:$0xf]
        %v504 = vunpack.c.l.b16 %v495
        %v505 = vpack.c.b16 %v504, %v504
        %v512 = vunpack.c.l.b16 %v497
        %v513 = vunpack.c.l.b16 %v498
        %v514 = vunpack.c.l.b16 %v499
        %v515 = vunpack.c.l.b16 %v500
        %v516 = vunpack.c.l.b16 %v501
        %v517 = vunpack.c.l.b16 %v502
        %v518 = vpack.c.b16 %v513, %v512
        %v519 = vpack.c.b16 %v515, %v514
        %v520 = vpack.c.b16 %v517, %v516
        %v524 = vsel %vm342, %v432, 0
        %v527 = vsel %vm342, %v505, 0
        %529 = vmatpush.bf16.msra.mxu0 0
        %530 = vmatpush.bf16.msra.mxu0 0
        %531 = vmatpush.bf16.msra.mxu0 0
        %532 = vmatpush.bf16.msra.mxu0 0
        %533 = vmatpush.bf16.msra.mxu0 0
        %534 = vmatpush.bf16.msra.mxu0 %v520
        %535 = vmatpush.bf16.msra.mxu0 %v519
        %536 = vmatpush.bf16.msra.mxu0 %v518
        %537 = vmatmul.bf16.gmra.mxu0 %v524
        %v538 = vpop.f32.mrf.mxu0
        %v539 = vadd.f32 0.0, %v538
        %v540 = vpop.f32.mrf.mxu0
        %v541 = vadd.f32 0.0, %v540
        %542 = vmatmul.bf16.gmra.mxu0 %v527
        %v543 = vpop.f32.mrf.mxu0
        %v544 = vadd.f32 0.0, %v543
        %v545 = vpop.f32.mrf.mxu0
        %546 = vdwg.mxu0
        %v547 = vadd.f32 %v492, %v539
        %v548 = vadd.f32 %v493, %v541
        %v549 = vadd.f32 %v494, %v544
        %v550 = vlaneseq
        %v551 = vshrl.u32 %v550, 7
        %v552 = vadd.s32 %v551, 8
        %v553 = vadd.s32 %v551, 16
        %vm554 = vcmp.lt.s32.totalorder %v551, 0
        %v555 = vsub.s32 0, %v551
        %v556 = vsel %vm554, %v555, %v551
        %v557 = vand.u32 %v556, 65535
        %v558 = vshrl.u32 %v556, 16
        %v560 = vmul.u32 %v557, 52429
        %v561 = vmul.u32 %v557, 52428
        %v562 = vmul.u32 %v558, 52429
        %v563 = vmul.u32 %v558, 52428
        %v564 = vshll.u32 %v561, 16
        %v565 = vshrl.u32 %v561, 16
        %v566 = vshll.u32 %v562, 16
        %v567 = vshrl.u32 %v562, 16
        %vm568 = vc.u32 %v560, %v564
        %v569 = vsel %vm568, 1, 0
        %v570 = vadd.s32 %v560, %v564
        %v571 = vadd.s32 %v563, %v569
        %vm572 = vc.u32 %v570, %v566
        %v573 = vsel %vm572, 1, 0
        %v574 = vadd.s32 %v570, %v566
        %v575 = vadd.s32 %v571, %v573
        %v576 = vadd.s32 %v575, %v565
        %v577 = vadd.s32 %v576, %v567
        %v578 = vshrl.u32 %v577, 2
        %v579 = vmul.u32 %v578, 5
        %v580 = vsub.s32 %v556, %v579
        %v581 = vsub.s32 0, %v580
        %v582 = vsel %vm554, %v581, %v580
        %vm583 = vcmp.lt.s32.totalorder %v552, 0
        %v584 = vsub.s32 0, %v552
        %v585 = vsel %vm583, %v584, %v552
        %v586 = vand.u32 %v585, 65535
        %v587 = vshrl.u32 %v585, 16
        %v589 = vmul.u32 %v586, 52429
        %v590 = vmul.u32 %v586, 52428
        %v591 = vmul.u32 %v587, 52429
        %v592 = vmul.u32 %v587, 52428
        %v593 = vshll.u32 %v590, 16
        %v594 = vshrl.u32 %v590, 16
        %v595 = vshll.u32 %v591, 16
        %v596 = vshrl.u32 %v591, 16
        %vm597 = vc.u32 %v589, %v593
        %v598 = vsel %vm597, 1, 0
        %v599 = vadd.s32 %v589, %v593
        %v600 = vadd.s32 %v592, %v598
        %vm601 = vc.u32 %v599, %v595
        %v602 = vsel %vm601, 1, 0
        %v603 = vadd.s32 %v599, %v595
        %v604 = vadd.s32 %v600, %v602
        %v605 = vadd.s32 %v604, %v594
        %v606 = vadd.s32 %v605, %v596
        %v607 = vshrl.u32 %v606, 2
        %v608 = vmul.u32 %v607, 5
        %v609 = vsub.s32 %v585, %v608
        %v610 = vsub.s32 0, %v609
        %v611 = vsel %vm583, %v610, %v609
        %vm612 = vcmp.lt.s32.totalorder %v553, 0
        %v613 = vsub.s32 0, %v553
        %v614 = vsel %vm612, %v613, %v553
        %v615 = vand.u32 %v614, 65535
        %v616 = vshrl.u32 %v614, 16
        %v618 = vmul.u32 %v615, 52429
        %v619 = vmul.u32 %v615, 52428
        %v620 = vmul.u32 %v616, 52429
        %v621 = vmul.u32 %v616, 52428
        %v622 = vshll.u32 %v619, 16
        %v623 = vshrl.u32 %v619, 16
        %v624 = vshll.u32 %v620, 16
        %v625 = vshrl.u32 %v620, 16
        %vm626 = vc.u32 %v618, %v622
        %v627 = vsel %vm626, 1, 0
        %v628 = vadd.s32 %v618, %v622
        %v629 = vadd.s32 %v621, %v627
        %vm630 = vc.u32 %v628, %v624
        %v631 = vsel %vm630, 1, 0
        %v632 = vadd.s32 %v628, %v624
        %v633 = vadd.s32 %v629, %v631
        %v634 = vadd.s32 %v633, %v623
        %v635 = vadd.s32 %v634, %v625
        %v636 = vshrl.u32 %v635, 2
        %v637 = vmul.u32 %v636, 5
        %v638 = vsub.s32 %v614, %v637
        %v639 = vsub.s32 0, %v638
        %v640 = vsel %vm612, %v639, %v638
        %vm641 = vcmp.ne.s32.totalorder %v582, 0
        %vm642 = vcmp.ne.s32.totalorder %v611, 0
        %vm643 = vcmp.ne.s32.totalorder %v640, 0
        %vm644 = vcmp.lt.s32.totalorder %v582, 0
        %vm645 = vcmp.lt.s32.totalorder %v611, 0
        %vm646 = vcmp.lt.s32.totalorder %v640, 0
        %vm647 = vmand %vm644, %vm641
        %vm648 = vmand %vm645, %vm642
        %vm649 = vmand %vm646, %vm643
        %v650 = vadd.s32 %v582, 5
        %v651 = vadd.s32 %v611, 5
        %v652 = vadd.s32 %v640, 5
        %v653 = vsel %vm647, %v650, %v582
        %v654 = vsel %vm648, %v651, %v611
        %v655 = vsel %vm649, %v652, %v640
        %vm656 = vcmp.lt.s32.totalorder %v653, 4
        %vm657 = vcmp.lt.s32.totalorder %v654, 4
        %vm658 = vcmp.lt.s32.totalorder %v655, 4
        %v659 = vld [vmem:[%s2] sm:$0x1]
        %v661 = vperm.slane %v659, 0
        %v663 = vadd.f32 %v547, %v661
        %v664 = vadd.f32 %v548, %v661
        %v665 = vadd.f32 %v549, %v661
        %v666 = vmax.f32 %v663, 0.0
        %v667 = vmax.f32 %v664, 0.0
        %v668 = vmax.f32 %v665, 0.0
        %v669 = vsel %vm656, 1, 0
        %v670 = vsel %vm657, 1, 0
        %v671 = vsel %vm658, 1, 0
        %vm672 = vcmp.eq.s32.totalorder %v669, 1
        %vm673 = vcmp.eq.s32.totalorder %v670, 1
        %vm674 = vcmp.eq.s32.totalorder %v671, 1
        %v675 = vsel %vm672, %v666, 0.0
        %v676 = vsel %vm673, %v667, 0.0
        %v677 = vsel %vm674, %v668, 0.0
        %vm678 = vcmask 125952
        %679 = vst.msk [vmem:[#allocation2] sm:$0xf] %vm678, 0
        %680 = vst.msk [vmem:[#allocation2 + $0x4] sm:$0xf] %vm678, 0
        %v681 = vpack.c.bf16 %v675, %v675
        %v682 = vpack.c.bf16 %v676, %v676
        %v683 = vpack.c.bf16 %v677, %v677
        %684 = vst.msk [vmem:[#allocation2 + $0x8] sm:$0xf] %vm678, %v681
        %685 = vst.msk [vmem:[#allocation2 + $0xc] sm:$0xf] %vm678, %v682
        %vm686 = vcmask 123904
        %687 = vst.msk [vmem:[#allocation2 + $0x10] sm:$0x3] %vm686, %v683
        %v688 = vld [vmem:[#allocation2 + $0x8] sm:$0xf]
        %v689 = vld [vmem:[#allocation2 + $0xc] sm:$0xf]
        %v690 = vld [vmem:[#allocation2 + $0x10] sm:$0x3]
        %v691 = vld [vmem:[%s3] sm:$0xf]
        %v692 = vld [vmem:[%s3 + $0x4] sm:$0xf]
        %v693 = vld [vmem:[#allocation2 + $0x4] sm:$0x8]
        %s694 = scalar_lea.vmem %s3, 8
        %v695 = vld [vmem:[%s694] sm:$0xc]
        %v696 = vld [vmem:[%s694 + $0x4] sm:$0x3]
        %v701 = vunpack.c.l.b16 %v693
        %v702 = vunpack.c.l.b16 %v688
        %v703 = vunpack.c.l.b16 %v689
        %v704 = vunpack.c.l.b16 %v690
        %v705 = vpack.c.b16 %v702, %v701
        %v706 = vpack.c.b16 %v704, %v703
        %vm707 = vsmask.f32 4352
        %v709 = vshrl.u32 %v705, 16
        %v711 = vrot.slane %v709, 3
        %v712 = vshll.u32 %v705, 16
        %v714 = vrot.slane %v712, 4
        %v715 = vor.u32 %v711, %v714
        %v717 = vshrl.u32 %v706, 16
        %v719 = vrot.slane %v717, 3
        %v720 = vshll.u32 %v706, 16
        %v722 = vrot.slane %v720, 4
        %v723 = vor.u32 %v719, %v722
        %v724 = vsel %vm707, %v715, %v723
        %725 = vrot.lane.b32.xlu0 %v724, 124
        %v726 = vpop.permute.xlu0 %725
        %727 = vrot.lane.b32.xlu0 %v723, 124
        %v728 = vpop.permute.xlu0 %727
        %v731 = vunpack.c.l.b16 %v695
        %v732 = vunpack.c.l.b16 %v696
        %v733 = vpack.c.b16 %v732, %v731
        %v734 = vrot.slane %v733, 2
        %vm735 = vcmask 64512
        %v737 = vsel %vm735, %v726, 0
        %v740 = vsel %vm735, %v728, 0
        %vm742 = vcmask 1043456
        %v744 = vsel %vm742, %v734, 0
        %746 = vmatpush.bf16.msra.mxu0 0
        %747 = vmatpush.bf16.msra.mxu0 0
        %748 = vmatpush.bf16.msra.mxu0 0
        %749 = vmatpush.bf16.msra.mxu0 0
        %750 = vmatpush.bf16.msra.mxu0 0
        %751 = vmatpush.bf16.msra.mxu0 0
        %752 = vmatpush.bf16.msra.mxu0 0
        %753 = vmatpush.bf16.msra.mxu0 %v744
        %754 = vmatmul.bf16.gmra.mxu0 %v737
        %v755 = vpop.f32.mrf.mxu0
        %v756 = vadd.f32 0.0, %v755
        %v757 = vpop.f32.mrf.mxu0
        %v758 = vadd.f32 0.0, %v757
        %759 = vmatmul.bf16.gmra.mxu0 %v740
        %v760 = vpop.f32.mrf.mxu0
        %v761 = vadd.f32 0.0, %v760
        %v762 = vpop.f32.mrf.mxu0
        %763 = vdwg.mxu0
        %v764 = vpack.c.b16 %v703, %v702
        %v765 = vpack.c.b16 %v704, %v704
        %v768 = vunpack.c.l.b16 %v691
        %v769 = vunpack.c.l.b16 %v692
        %v770 = vpack.c.b16 %v769, %v768
        %vm772 = vcmask 130048
        %v774 = vsel %vm772, %v764, 0
        %v777 = vsel %vm772, %v765, 0
        %779 = vmatpush.bf16.msra.mxu0 0
        %780 = vmatpush.bf16.msra.mxu0 0
        %781 = vmatpush.bf16.msra.mxu0 0
        %782 = vmatpush.bf16.msra.mxu0 0
        %783 = vmatpush.bf16.msra.mxu0 0
        %784 = vmatpush.bf16.msra.mxu0 0
        %785 = vmatpush.bf16.msra.mxu0 0
        %786 = vmatpush.bf16.msra.mxu0 %v770
        %787 = vmatmul.bf16.gmra.mxu0 %v774
        %v788 = vpop.f32.mrf.mxu0
        %v789 = vadd.f32 %v756, %v788
        %v790 = vpop.f32.mrf.mxu0
        %v791 = vadd.f32 %v758, %v790
        %792 = vmatmul.bf16.gmra.mxu0 %v777
        %v793 = vpop.f32.mrf.mxu0
        %v794 = vadd.f32 %v761, %v793
        %v795 = vpop.f32.mrf.mxu0
        %796 = vdwg.mxu0
        %v797 = vld [vmem:[#allocation2 + $0x4] sm:$0xe]
        %v798 = vld [vmem:[#allocation2 + $0x8] sm:$0xf]
        %v799 = vld [vmem:[#allocation2 + $0xc] sm:$0xf]
        %s800 = scalar_lea.vmem %s3, 16
        %v801 = vld [vmem:[%s800 + $0x4] sm:$0xf]
        %v805 = vunpack.c.l.b16 %v797
        %v806 = vunpack.c.l.b16 %v798
        %v807 = vunpack.c.l.b16 %v799
        %v808 = vpack.c.b16 %v806, %v805
        %v809 = vpack.c.b16 %v807, %v807
        %vm810 = vsmask.f32 6400
        %v812 = vshrl.u32 %v808, 16
        %v814 = vrot.slane %v812, 1
        %v815 = vshll.u32 %v808, 16
        %v817 = vrot.slane %v815, 2
        %v818 = vor.u32 %v814, %v817
        %v820 = vshrl.u32 %v809, 16
        %v822 = vrot.slane %v820, 1
        %v823 = vshll.u32 %v809, 16
        %v825 = vrot.slane %v823, 2
        %v826 = vor.u32 %v822, %v825
        %v827 = vsel %vm810, %v818, %v826
        %828 = vrot.lane.b32.xlu0 %v827, 120
        %v829 = vpop.permute.xlu0 %828
        %830 = vrot.lane.b32.xlu0 %v826, 120
        %v831 = vpop.permute.xlu0 %830
        %v833 = vsel %vm735, %v829, 0
        %v836 = vsel %vm735, %v831, 0
        %v839 = vsel %vm742, %v801, 0
        %841 = vmatpush.bf16.msra.mxu0 0
        %842 = vmatpush.bf16.msra.mxu0 0
        %843 = vmatpush.bf16.msra.mxu0 0
        %844 = vmatpush.bf16.msra.mxu0 0
        %845 = vmatpush.bf16.msra.mxu0 0
        %846 = vmatpush.bf16.msra.mxu0 0
        %847 = vmatpush.bf16.msra.mxu0 0
        %848 = vmatpush.bf16.msra.mxu0 %v839
        %849 = vmatmul.bf16.gmra.mxu0 %v833
        %v850 = vpop.f32.mrf.mxu0
        %v851 = vadd.f32 0.0, %v850
        %v852 = vpop.f32.mrf.mxu0
        %v853 = vadd.f32 0.0, %v852
        %854 = vmatmul.bf16.gmra.mxu0 %v836
        %v855 = vpop.f32.mrf.mxu0
        %v856 = vadd.f32 0.0, %v855
        %v857 = vpop.f32.mrf.mxu0
        %858 = vdwg.mxu0
        %v859 = vadd.f32 %v789, %v851
        %v860 = vadd.f32 %v791, %v853
        %v861 = vadd.f32 %v794, %v856
        %v862 = vld [vmem:[#allocation2 + $0xc] sm:$0x7]
        %s863 = scalar_lea.vmem %s3, 24
        %v864 = vld [vmem:[%s863 + $0x4] sm:$0x3]
        %v866 = vunpack.c.l.b16 %v862
        %v867 = vpack.c.b16 %v866, %v866
        %vm868 = vcmask 1046528
        %v869 = vrot.slane %v808, 1
        %v870 = vrot.slane %v867, 1
        %v871 = vsel %vm868, %v869, %v870
        %872 = vrot.lane.b32.xlu0 %v871, 120
        %v873 = vpop.permute.xlu0 %872
        %874 = vrot.lane.b32.xlu0 %v870, 120
        %v875 = vpop.permute.xlu0 %874
        %vm876 = vcmask 31744
        %v878 = vsel %vm876, %v873, 0
        %v881 = vsel %vm876, %v875, 0
        %vm883 = vcmask 1041408
        %v885 = vsel %vm883, %v864, 0
        %887 = vmatpush.bf16.msra.mxu0 0
        %888 = vmatpush.bf16.msra.mxu0 0
        %889 = vmatpush.bf16.msra.mxu0 0
        %890 = vmatpush.bf16.msra.mxu0 0
        %891 = vmatpush.bf16.msra.mxu0 0
        %892 = vmatpush.bf16.msra.mxu0 0
        %893 = vmatpush.bf16.msra.mxu0 0
        %894 = vmatpush.bf16.msra.mxu0 %v885
        %895 = vmatmul.bf16.gmra.mxu0 %v878
        %v896 = vpop.f32.mrf.mxu0
        %v897 = vadd.f32 0.0, %v896
        %v898 = vpop.f32.mrf.mxu0
        %v899 = vadd.f32 0.0, %v898
        %900 = vmatmul.bf16.gmra.mxu0 %v881
        %v901 = vpop.f32.mrf.mxu0
        %v902 = vadd.f32 0.0, %v901
        %v903 = vpop.f32.mrf.mxu0
        %904 = vdwg.mxu0
        %v905 = vadd.f32 %v859, %v897
        %v906 = vadd.f32 %v860, %v899
        %v907 = vadd.f32 %v861, %v902
        %v908 = vld [vmem:[%s4] sm:$0x1]
        %v910 = vperm.slane %v908, 0
        %v912 = vadd.f32 %v905, %v910
        %v913 = vadd.f32 %v906, %v910
        %v914 = vadd.f32 %v907, %v910
        %v915 = vmax.f32 %v912, 0.0
        %v916 = vmax.f32 %v913, 0.0
        %v917 = vmax.f32 %v914, 0.0
        %v921 = vrot.slane %v915, 1
        %v922 = vrot.slane %v915, 2
        %v923 = vrot.slane %v915, 3
        %v924 = vrot.slane %v915, 5
        %v925 = vrot.slane %v915, 6
        %v926 = vrot.slane %v915, 7
        %v927 = vrot.slane %v916, 2
        %v928 = vrot.slane %v916, 3
        %v929 = vrot.slane %v916, 4
        %v930 = vrot.slane %v916, 5
        %v931 = vrot.slane %v916, 7
        %v932 = vrot.slane %v917, 1
        %v933 = vrot.slane %v917, 2
        %934 = vst [vmem:[#allocation1] ss:$9 sm:$0xff] %v915
        %s935 = scalar_lea.vmem [#allocation1], 1
        %936 = vst [vmem:[%s935] ss:$9 sm:$0xff] %v921
        %s937 = scalar_lea.vmem [#allocation1], 2
        %938 = vst [vmem:[%s937] ss:$9 sm:$0xff] %v922
        %s939 = scalar_lea.vmem [#allocation1], 3
        %940 = vst [vmem:[%s939] ss:$9 sm:$0xff] %v923
        %s941 = scalar_lea.vmem [#allocation1], 4
        %942 = vst [vmem:[%s941] ss:$9 sm:$0xff] %v924
        %s943 = scalar_lea.vmem [#allocation1], 5
        %944 = vst [vmem:[%s943] ss:$9 sm:$0xff] %v925
        %s945 = scalar_lea.vmem [#allocation1], 6
        %946 = vst [vmem:[%s945] ss:$9 sm:$0xff] %v926
        %s947 = scalar_lea.vmem [#allocation1], 7
        %948 = vst [vmem:[%s947] ss:$9 sm:$0xff] %v916
        %v949 = vld [vmem:[#allocation1] sm:$0xff]
        %950 = vst [vmem:[#allocation1] ss:$9 sm:$0xff] %v927
        %951 = vst [vmem:[%s935] ss:$9 sm:$0xff] %v928
        %952 = vst [vmem:[%s937] ss:$9 sm:$0xff] %v929
        %953 = vst [vmem:[%s939] ss:$9 sm:$0xff] %v930
        %954 = vst [vmem:[%s941] ss:$9 sm:$0xff] %v931
        %955 = vst [vmem:[%s943] ss:$9 sm:$0xff] %v917
        %956 = vst [vmem:[%s945] ss:$9 sm:$0xff] %v932
        %957 = vst [vmem:[%s947] ss:$9 sm:$0xff] %v933
        %v958 = vld [vmem:[#allocation1] sm:$0xff]
        %v961 = vpack.c.bf16 %v958, %v949
        %v962 = vld [vmem:[%s5] sm:$0xf]
        %v963 = vld [vmem:[%s6] sm:$0x1]
        %v965 = vperm.slane %v963, 0
        %v968 = vsel %vm735, %v961, 0
        %v971 = vsel %vm742, %v962, 0
        %973 = vmatpush.bf16.msra.mxu0 0
        %974 = vmatpush.bf16.msra.mxu0 0
        %975 = vmatpush.bf16.msra.mxu0 0
        %976 = vmatpush.bf16.msra.mxu0 0
        %977 = vmatpush.bf16.msra.mxu0 0
        %978 = vmatpush.bf16.msra.mxu0 0
        %979 = vmatpush.bf16.msra.mxu0 0
        %980 = vmatpush.bf16.msra.mxu0 %v971
        %981 = vmatmul.bf16.gmra.mxu0 %v968
        %v982 = vpop.f32.mrf.mxu0
        %v983 = vadd.f32 %v965, %v982
        %v984 = vpop.f32.mrf.mxu0
        %v985 = vadd.f32 %v965, %v984
        %986 = vdwg.mxu0
        %vm987 = vcmask 261120
        %988 = vst.msk [vmem:[%s271] sm:$0xff] %vm987, %v983
        %989 = vst.msk [vmem:[%s271 + $0x8] sm:$0xff] %vm987, %v985
        %s990 = sand.u32 %s181, 1
        %s991 = scalar_lea.sflag [#allocation4], %s990
        %s992 = sand.u32 %s181, 1
        %s993 = smul.addr %s992, 16
        %s994 = scalar_lea.vmem [#allocation3], %s993
        // Predicated region
        $region49: #{conv_stem_forward.1} parent=47 // pred_check
          %p995 = pneg %p191
        $region50: #{conv_stem_forward.1} parent=47 // pred_check_branch
          %997 = sbr.rel (%p995) target = $region52
        $region51: #{conv_stem_forward.1} parent=47 // pred_region
          %999 = vsyncadd %s991, 0
          %s1000 = smul.addr %s21, 2
          %s1001 = smul.addr %s1000, 8
          %s1002 = scalar_lea.hbm %s7, %s1001
          %s1003 = sshll.u32 %s994, 4
          %s1004 = int_to_ptr.vmem [resolvable:$true] %s1003
          %s1005 = sshll.u32 %s1002, 4
          %s1006 = int_to_ptr.hbm [resolvable:$true] %s1005
          %1011 = dma.vmem_to_hbm [thread:$0]  %s1004, 256, %s1006, %s991, 128, 128, 8
        $region52: #{conv_stem_forward.1} parent=47 // pred_fallthru
          _
      $region48: #{conv_stem_forward.1} parent=5 // pred_fallthru
        _
      %p1012 = scmp.le.s32.totalorder 2, %s16
      // Predicated region
      $region53: #{conv_stem_forward.1} parent=5 // pred_check
        %p1013 = pneg %p1012
      $region54: #{conv_stem_forward.1} parent=5 // pred_check_branch
        %1015 = sbr.rel (%p1013) target = $region56
      $region55: #{conv_stem_forward.1} parent=5 // pred_region
        %s1016 = ssub.s32 %s16, 2
        // Predicated region
        $region57: #{conv_stem_forward.1} parent=55 // pred_check
          %p1017 = pneg %p197
        $region58: #{conv_stem_forward.1} parent=55 // pred_check_branch
          %1019 = sbr.rel (%p1017) target = $region60
        $region59: #{conv_stem_forward.1} parent=55 // pred_region
          %s1020 = sand.u32 %s182, 1
          %s1021 = scalar_lea.sflag [#allocation4], %s1020
          %s1022 = sand.u32 %s182, 1
          %s1023 = smul.addr %s1022, 16
          %s1024 = scalar_lea.vmem [#allocation3], %s1023
          %1026 = dma.done %s1021, 256
        $region60: #{conv_stem_forward.1} parent=55 // pred_fallthru
          _
      $region56: #{conv_stem_forward.1} parent=5 // pred_fallthru
        _
    $region6: #{conv_stem_forward.1} parent=1 // loop_footer
      %s20 = sadd.s32 1, %s16
    $region7: #{conv_stem_forward.1} parent=1 // loop_footer_branch
      %15 = sbr.rel target = $region3
    $region8: #{conv_stem_forward.1} parent=1 // loop_exit
      _
    %1027 = vsyncpa [#allocation4], 1
    %s1028 = scalar_lea.sflag [#allocation4], 1
    %1029 = vsyncpa %s1028, 1

</llo_original>
